<compile_context>
chip_gen: v6e
topology: v6e:2x2x1
jax: 0.10.0
libtpu: 0.0.40
codegen_flags: <defaults>
</compile_context>

<pallas_src>
import math

import jax
import jax.numpy as jnp
from jax import lax
from jax.experimental import pallas as pl
from jax.experimental.pallas import tpu as pltpu


# ----------------------------------------------------------------------------
# small helpers
# ----------------------------------------------------------------------------
def _round_up(x, m):
    return ((x + m - 1) // m) * m


def _gelu_exact(x):
    # matches torch.nn.GELU() default (erf form)
    return 0.5 * x * (1.0 + lax.erf(x * (1.0 / math.sqrt(2.0))))


# ----------------------------------------------------------------------------
# Pallas kernels
# ----------------------------------------------------------------------------
def _sparse_kernel(coords_ref, labels_ref, gauss_ref, emb_ref, out_ref):
    """Random Fourier positional encoding + label-dependent embedding merge.

    coords_ref : [M, 2]  normalized coords in [0, 1]
    labels_ref : [M, 1]  float labels in {-1, 0, 1, 2, 3}
    gauss_ref  : [2, E//2] positional-encoding Gaussian matrix
    emb_ref    : [5, E]  rows = [not_a_point, pe0, pe1, pe2, pe3]
    out_ref    : [M, E]
    """
    c = 2.0 * coords_ref[...] - 1.0                                  # [M, 2]
    g = gauss_ref[...]                                               # [2, F]
    proj = (2.0 * math.pi) * (c[:, 0:1] * g[0:1, :] + c[:, 1:2] * g[1:2, :])
    pe = jnp.concatenate([jnp.sin(proj), jnp.cos(proj)], axis=-1)    # [M, E]

    lab = labels_ref[...]                                            # [M, 1]
    keep = (lab != -1.0).astype(jnp.float32)   # zero the PE for padding points
    add = (lab == -1.0).astype(jnp.float32) * emb_ref[0:1, :]
    for v in range(4):
        add = add + (lab == float(v)).astype(jnp.float32) * emb_ref[v + 1:v + 2, :]
    out_ref[...] = pe * keep + add


def _fused_mask_kernel(x_ref, w1_ref, b1_ref, g1_ref, bt1_ref,
                       w2_ref, b2_ref, g2_ref, bt2_ref,
                       w3_ref, b3_ref, out_ref):
    """Fused mask_downscaling for one lane-tile of output pixels.

    Layout: channels on sublanes, pixels on lanes.
      x_ref  : [16, TM]     16 = 4x4 space-to-depth taps per final output pixel
      w1_ref : [4*C1, 16]   conv1 (2x2,s2) over the 4x4 patch; row = c1*4 + p
      b1/g1/bt1 : [4*C1, 1] bias / LN gamma / LN beta (repeated per position)
      w2_ref : [C2, 4*C1]   conv2 (2x2,s2); col = c1*4 + ky*2 + kx
      w3_ref : [E, C2]      conv3 (1x1)
      out    : [E, TM]      lane-dense output tile (TM multiple of 128)
    """
    x = x_ref[...]                                                   # [16, TM]

    # ---- conv1: 4 output positions x C1 channels per pixel (tiny matmul) ----
    h = jnp.dot(w1_ref[...], x, preferred_element_type=jnp.float32) + b1_ref[...]

    # ---- LayerNorm2d over C1 channels (rows {c1*4 + p}), exact f32 VPU math ----
    n_rows = h.shape[0]
    c1 = n_rows // 4
    s = h[0:4, :]
    for c in range(1, c1):
        s = s + h[c * 4:(c + 1) * 4, :]
    mu = jnp.concatenate([s * (1.0 / c1)] * c1, axis=0)              # [4*C1, TM]
    d = h - mu
    dd = d * d
    s2 = dd[0:4, :]
    for c in range(1, c1):
        s2 = s2 + dd[c * 4:(c + 1) * 4, :]
    var = jnp.concatenate([s2 * (1.0 / c1)] * c1, axis=0)
    a1 = _gelu_exact(d * lax.rsqrt(var + 1e-6) * g1_ref[...] + bt1_ref[...])

    # ---- conv2 (2x2, stride 2) ----
    y = jnp.dot(w2_ref[...], a1, preferred_element_type=jnp.float32) + b2_ref[...]

    # ---- LayerNorm2d over all C2 channels (full sublane reduction) ----
    mu2 = jnp.mean(y, axis=0, keepdims=True)
    d2 = y - mu2
    var2 = jnp.mean(d2 * d2, axis=0, keepdims=True)
    a2 = _gelu_exact(d2 * lax.rsqrt(var2 + 1e-6) * g2_ref[...] + bt2_ref[...])

    # ---- conv3 (1x1): the only contraction big enough to be worth the MXU ----
    out_ref[...] = (jnp.dot(w3_ref[...], a2, preferred_element_type=jnp.float32)
                    + b3_ref[...])


# ----------------------------------------------------------------------------
# pallas_call wrappers
# ----------------------------------------------------------------------------
def _full_spec(shape):
    nd = len(shape)
    return pl.BlockSpec(shape, lambda i, nd=nd: (0,) * nd)


def _run_small(kernel, out_shape, *args):
    """Single whole-block launch (sparse path: ~8 rows, launch-overhead bound)."""
    return pl.pallas_call(
        kernel,
        out_shape=out_shape,
        grid=(1,),
        in_specs=[_full_spec(a.shape) for a in args],
        out_specs=_full_spec(out_shape.shape),
    )(*args)


def _mask_downscale_pallas(params, masks):
    """Fused conv1+LN+GELU -> conv2+LN+GELU -> conv3 in one tiled pallas_call."""
    B = masks.shape[0]
    Hm, Wm = masks.shape[2], masks.shape[3]
    assert Hm % 4 == 0 and Wm % 4 == 0, "mask H/W must be divisible by 4"
    He, We = Hm // 4, Wm // 4
    C1 = params["w1"].shape[0]
    C2 = params["w2"].shape[0]
    E = params["w3"].shape[0]

    # 4x4 space-to-depth with pixels on the lane axis:
    #   xT[dy*4 + dx, (b*He + h)*We + w] = mask[b, 0, 4h+dy, 4w+dx]
    # TODO(synk): fold this single transpose into the kernel (strided pl.ds loads
    # from an ANY-space mask ref) to also save this one read+write of the raw mask.
    x = masks[:, 0].astype(jnp.float32)
    xT = x.reshape(B, He, 4, We, 4).transpose(2, 4, 0, 1, 3).reshape(16, B * He * We)

    M2 = B * He * We
    tm = min(2048, _round_up(M2, 128))          # lane-dense tile, >=128 lanes
    Mp = _round_up(M2, tm)
    if Mp != M2:
        xT = jnp.pad(xT, ((0, 0), (0, Mp - M2)))

    # conv1 re-expressed over the 4x4 patch: W1p[c1*4 + py*2+px, dy*4+dx]
    eye2 = jnp.eye(2, dtype=jnp.float32)
    w1k = params["w1"][:, 0].astype(jnp.float32)                      # (C1,2,2)
    w1p = jnp.einsum("ckl,pa,qb->cpqakbl", w1k, eye2, eye2).reshape(4 * C1, 16)
    b1c = jnp.repeat(params["b1"], 4).reshape(4 * C1, 1)
    g1c = jnp.repeat(params["ln1_w"], 4).reshape(4 * C1, 1)
    bt1c = jnp.repeat(params["ln1_b"], 4).reshape(4 * C1, 1)
    w2p = params["w2"].reshape(C2, 4 * C1)      # OIHW flatten == col c1*4+ky*2+kx
    b2c = params["b2"].reshape(C2, 1)
    g2c = params["ln2_w"].reshape(C2, 1)
    bt2c = params["ln2_b"].reshape(C2, 1)
    w3m = params["w3"].reshape(E, C2)
    b3c = params["b3"].reshape(E, 1)
    small = [w1p, b1c, g1c, bt1c, w2p, b2c, g2c, bt2c, w3m, b3c]

    n_tiles = Mp // tm
    param_bytes = 4 * sum(int(a.size) for a in small)
    flops = 2 * Mp * (16 * 4 * C1 + 4 * C1 * C2 + C2 * E) + 12 * Mp * (4 * C1 + C2)
    transc = Mp * (4 * C1 + C2 + 8)             # erf + rsqrt per pixel
    bytes_acc = 4 * Mp * (16 + E) + param_bytes
    # VMEM budget: double-buffered in/out tiles + resident params (+2x headroom),
    # capped at 32 MiB so the same config is safe on v5e/v6e (128 MiB) and v7x (64 MiB).
    vmem_need = 2 * 4 * tm * (16 + E) + param_bytes
    vmem_limit = int(min(32 * 1024 * 1024, max(4 * 1024 * 1024, 2 * vmem_need)))

    out = pl.pallas_call(
        _fused_mask_kernel,
        out_shape=jax.ShapeDtypeStruct((E, Mp), jnp.float32),
        grid=(n_tiles,),
        in_specs=[pl.BlockSpec((16, tm), lambda i: (0, i))]
                 + [pl.BlockSpec(a.shape, lambda i: (0, 0)) for a in small],
        out_specs=pl.BlockSpec((E, tm), lambda i: (0, i)),
        compiler_params=pltpu.CompilerParams(
            dimension_semantics=("parallel",),   # megacore on v7x; no-op on v5e/v6e
            vmem_limit_bytes=vmem_limit),
        cost_estimate=pl.CostEstimate(
            flops=int(flops), transcendentals=int(transc),
            bytes_accessed=int(bytes_acc)),
    )(xT, *small)

    # [E, B*He*We] -> NCHW [B, E, He, We] to match the torch module
    return out[:, :M2].reshape(E, B, He, We).transpose(1, 0, 2, 3)


# ----------------------------------------------------------------------------
# Parameter init (deterministic, synthetic)
# ----------------------------------------------------------------------------
def init_params(key, embed_dim, mask_in_chans):
    E = embed_dim
    C1 = mask_in_chans // 4
    C2 = mask_in_chans
    ks = jax.random.split(key, 10)
    return dict(
        pe_gauss=jax.random.normal(ks[0], (2, E // 2), jnp.float32),
        not_a_point=jax.random.normal(ks[1], (1, E), jnp.float32),
        point_embeds=jax.random.normal(ks[2], (4, E), jnp.float32),
        no_mask_embed=jax.random.normal(ks[3], (1, E), jnp.float32),
        w1=jax.random.normal(ks[4], (C1, 1, 2, 2), jnp.float32) * 0.2,
        b1=jax.random.normal(ks[5], (C1,), jnp.float32) * 0.1,
        ln1_w=jnp.ones((C1,), jnp.float32),
        ln1_b=jnp.zeros((C1,), jnp.float32),
        w2=jax.random.normal(ks[6], (C2, C1, 2, 2), jnp.float32) * 0.2,
        b2=jax.random.normal(ks[7], (C2,), jnp.float32) * 0.1,
        ln2_w=jnp.ones((C2,), jnp.float32),
        ln2_b=jnp.zeros((C2,), jnp.float32),
        w3=jax.random.normal(ks[8], (E, C2, 1, 1), jnp.float32) * 0.2,
        b3=jax.random.normal(ks[9], (E,), jnp.float32) * 0.1,
    )


# ----------------------------------------------------------------------------
# Forward wrapper (glue in plain JAX, hot paths in Pallas)
# ----------------------------------------------------------------------------
def prompt_encoder_forward(params, image_embedding_size, input_image_size,
                           points=None, boxes=None, masks=None):
    E = params["not_a_point"].shape[1]
    Hi, Wi = input_image_size
    He, We = image_embedding_size

    if points is not None:
        bs = points[0].shape[0]
    elif boxes is not None:
        bs = boxes.shape[0]
    elif masks is not None:
        bs = masks.shape[0]
    else:
        bs = 1

    # ---- sparse embeddings (points + boxes) ----
    coords_list, labels_list = [], []
    if points is not None:
        coords, labels = points
        coords = coords.astype(jnp.float32) + 0.5
        labels = labels.astype(jnp.float32)
        if boxes is None:  # pad with a "not a point"
            coords = jnp.concatenate(
                [coords, jnp.zeros((bs, 1, 2), jnp.float32)], axis=1)
            labels = jnp.concatenate(
                [labels, -jnp.ones((bs, 1), jnp.float32)], axis=1)
        coords_list.append(coords)
        labels_list.append(labels)
    if boxes is not None:
        bc = boxes.astype(jnp.float32) + 0.5
        bc = bc.reshape(bs, 2, 2)
        coords_list.append(bc)
        labels_list.append(
            jnp.broadcast_to(jnp.array([[2.0, 3.0]], jnp.float32), (bs, 2)))

    if coords_list:
        coords_all = jnp.concatenate(coords_list, axis=1)             # [B, Ns, 2]
        labels_all = jnp.concatenate(labels_list, axis=1)             # [B, Ns]
        Ns = coords_all.shape[1]
        coords_norm = jnp.stack(
            [coords_all[..., 0] / Wi, coords_all[..., 1] / Hi], axis=-1)
        M = bs * Ns
        emb_table = jnp.concatenate(
            [params["not_a_point"], params["point_embeds"]], axis=0)  # [5, E]
        sparse_flat = _run_small(
            _sparse_kernel,
            jax.ShapeDtypeStruct((M, E), jnp.float32),
            coords_norm.reshape(M, 2),
            labels_all.reshape(M, 1),
            params["pe_gauss"],
            emb_table,
        )
        sparse_embeddings = sparse_flat.reshape(bs, Ns, E)
    else:
        sparse_embeddings = jnp.zeros((bs, 0, E), jnp.float32)

    # ---- dense embeddings (fused mask downscaling) ----
    if masks is not None:
        dense_embeddings = _mask_downscale_pallas(params, masks)
    else:
        dense_embeddings = jnp.broadcast_to(
            params["no_mask_embed"].reshape(1, E, 1, 1), (bs, E, He, We))

    return sparse_embeddings, dense_embeddings


# ----------------------------------------------------------------------------
# Pure-JAX reference (mirrors the PyTorch code) for correctness checking
# ----------------------------------------------------------------------------
def _reference_forward(params, image_embedding_size, input_image_size,
                       points, boxes, masks):
    Hi, Wi = input_image_size
    bs = points[0].shape[0]

    def pe_with_coords(c):  # c: [B, N, 2] raw pixel coords (already +0.5)
        c = jnp.stack([c[..., 0] / Wi, c[..., 1] / Hi], axis=-1)
        c = 2.0 * c - 1.0
        c = c @ params["pe_gauss"]
        c = 2.0 * math.pi * c
        return jnp.concatenate([jnp.sin(c), jnp.cos(c)], axis=-1)

    coords, labels = points
    coords = coords.astype(jnp.float32) + 0.5
    labels = labels.astype(jnp.float32)
    if boxes is None:
        coords = jnp.concatenate([coords, jnp.zeros((bs, 1, 2))], axis=1)
        labels = jnp.concatenate([labels, -jnp.ones((bs, 1))], axis=1)
    pe = pe_with_coords(coords)
    lab = labels[..., None]
    out = jnp.where(lab == -1, jnp.zeros_like(pe) + params["not_a_point"], pe)
    for i in range(4):
        out = jnp.where(lab == i, out + params["point_embeds"][i:i + 1], out)
    sparse = out
    if boxes is not None:
        bc = boxes.astype(jnp.float32) + 0.5
        bc = bc.reshape(bs, 2, 2)
        ce = pe_with_coords(bc)
        ce = ce.at[:, 0, :].add(params["point_embeds"][2])
        ce = ce.at[:, 1, :].add(params["point_embeds"][3])
        sparse = jnp.concatenate([sparse, ce], axis=1)

    def ln2d(x, w, b):
        u = x.mean(axis=1, keepdims=True)
        s = ((x - u) ** 2).mean(axis=1, keepdims=True)
        x = (x - u) / jnp.sqrt(s + 1e-6)
        return w[None, :, None, None] * x + b[None, :, None, None]

    def conv(x, w, b, stride):
        y = lax.conv_general_dilated(
            x, w, (stride, stride), "VALID",
            dimension_numbers=("NCHW", "OIHW", "NCHW"))
        return y + b[None, :, None, None]

    y = conv(masks.astype(jnp.float32), params["w1"], params["b1"], 2)
    y = _gelu_exact(ln2d(y, params["ln1_w"], params["ln1_b"]))
    y = conv(y, params["w2"], params["b2"], 2)
    y = _gelu_exact(ln2d(y, params["ln2_w"], params["ln2_b"]))
    y = conv(y, params["w3"], params["b3"], 1)
    return sparse, y


# ----------------------------------------------------------------------------
if __name__ == "__main__":
    embed_dim = 32
    image_embedding_size = (8, 8)
    input_image_size = (128, 128)
    mask_in_chans = 16
    B, Np = 2, 2

    key = jax.random.PRNGKey(0)
    kp, kc, kl, kb, km = jax.random.split(key, 5)
    params = init_params(kp, embed_dim, mask_in_chans)

    point_coords = jax.random.uniform(
        kc, (B, Np, 2), jnp.float32, 0.0, float(input_image_size[0]))
    point_labels = jnp.array([[1, 0], [0, 1]], jnp.int32)
    boxes = jax.random.uniform(
        kb, (B, 4), jnp.float32, 0.0, float(input_image_size[0]))
    masks = jax.random.normal(
        km, (B, 1, 4 * image_embedding_size[0], 4 * image_embedding_size[1]),
        jnp.float32)

    sparse, dense = prompt_encoder_forward(
        params, image_embedding_size, input_image_size,
        points=(point_coords, point_labels), boxes=boxes, masks=masks)
    sparse = jax.block_until_ready(sparse)
    dense = jax.block_until_ready(dense)

    # sanity check against a pure-JAX reference of the torch semantics
    ref_sparse, ref_dense = _reference_forward(
        params, image_embedding_size, input_image_size,
        (point_coords, point_labels), boxes, masks)
    assert sparse.shape == (B, Np + 2, embed_dim), sparse.shape
    assert dense.shape == (B, embed_dim, *image_embedding_size), dense.shape
    assert jnp.allclose(sparse, ref_sparse, rtol=5e-4, atol=5e-4)
    assert jnp.allclose(dense, ref_dense, rtol=5e-4, atol=5e-4)

    # also exercise the "no mask" dense path (broadcast of no_mask_embed)
    _, dense_nm = prompt_encoder_forward(
        params, image_embedding_size, input_image_size,
        points=(point_coords, point_labels), boxes=None, masks=None)
    jax.block_until_ready(dense_nm)
    assert dense_nm.shape == (B, embed_dim, *image_embedding_size)

    print("KERNEL_OK")
</pallas_src>

<mosaic_0001>
module attributes {stable_mosaic.version = 11 : i64} {
  func.func @_sparse_kernel(%arg0: i32, %arg1: memref<8x2xf32, #tpu.memory_space<vmem>>, %arg2: memref<8x1xf32, #tpu.memory_space<vmem>>, %arg3: memref<2x16xf32, #tpu.memory_space<vmem>>, %arg4: memref<5x32xf32, #tpu.memory_space<vmem>>, %arg5: memref<8x32xf32, #tpu.memory_space<vmem>>) attributes {dimension_semantics = [#tpu.dimension_semantics<arbitrary>], iteration_bounds = array<i64: 1>, scalar_prefetch = 0 : i64, scratch_operands = 0 : i64, tpu.core_type = #tpu.core_type<tc>, window_params = [{pipeline_mode = #tpu.pipeline_mode<synchronous>, transform_indices = @transform_0, window_bounds = array<i64: 8, 2>}, {pipeline_mode = #tpu.pipeline_mode<synchronous>, transform_indices = @transform_1, window_bounds = array<i64: 8, 1>}, {pipeline_mode = #tpu.pipeline_mode<synchronous>, transform_indices = @transform_2, window_bounds = array<i64: 2, 16>}, {pipeline_mode = #tpu.pipeline_mode<synchronous>, transform_indices = @transform_3, window_bounds = array<i64: 5, 32>}, {pipeline_mode = #tpu.pipeline_mode<synchronous>, transform_indices = @transform_4, window_bounds = array<i64: 8, 32>}]} {
    %c0 = arith.constant 0 : index
    %c0_0 = arith.constant 0 : index
    %0 = vector.load %arg1[%c0, %c0_0] : memref<8x2xf32, #tpu.memory_space<vmem>>, vector<8x2xf32>
    %cst = arith.constant 2.000000e+00 : f32
    %1 = vector.broadcast %cst : f32 to vector<8x2xf32>
    %2 = arith.mulf %1, %0 : vector<8x2xf32>
    %cst_1 = arith.constant 1.000000e+00 : f32
    %3 = vector.broadcast %cst_1 : f32 to vector<8x2xf32>
    %4 = arith.subf %2, %3 : vector<8x2xf32>
    %c0_2 = arith.constant 0 : index
    %c0_3 = arith.constant 0 : index
    %5 = vector.load %arg3[%c0_2, %c0_3] : memref<2x16xf32, #tpu.memory_space<vmem>>, vector<2x16xf32>
    %6 = vector.extract_strided_slice %4 {offsets = [0, 0], sizes = [8, 1], strides = [1, 1]} : vector<8x2xf32> to vector<8x1xf32>
    %7 = vector.extract_strided_slice %5 {offsets = [0, 0], sizes = [1, 16], strides = [1, 1]} : vector<2x16xf32> to vector<1x16xf32>
    %8 = vector.broadcast %6 : vector<8x1xf32> to vector<8x16xf32>
    %9 = vector.broadcast %7 : vector<1x16xf32> to vector<8x16xf32>
    %10 = arith.mulf %8, %9 : vector<8x16xf32>
    %11 = vector.extract_strided_slice %4 {offsets = [0, 1], sizes = [8, 1], strides = [1, 1]} : vector<8x2xf32> to vector<8x1xf32>
    %12 = vector.extract_strided_slice %5 {offsets = [1, 0], sizes = [1, 16], strides = [1, 1]} : vector<2x16xf32> to vector<1x16xf32>
    %13 = vector.broadcast %11 : vector<8x1xf32> to vector<8x16xf32>
    %14 = vector.broadcast %12 : vector<1x16xf32> to vector<8x16xf32>
    %15 = arith.mulf %13, %14 : vector<8x16xf32>
    %16 = arith.addf %10, %15 : vector<8x16xf32>
    %cst_4 = arith.constant 6.28318548 : f32
    %17 = vector.broadcast %cst_4 : f32 to vector<8x16xf32>
    %18 = arith.mulf %17, %16 : vector<8x16xf32>
    %19 = math.sin %18 : vector<8x16xf32>
    %20 = math.cos %18 : vector<8x16xf32>
    %21 = tpu.concatenate %19, %20 in 1 : vector<8x16xf32>, vector<8x16xf32> -> vector<8x32xf32>
    %c0_5 = arith.constant 0 : index
    %c0_6 = arith.constant 0 : index
    %22 = vector.load %arg2[%c0_5, %c0_6] : memref<8x1xf32, #tpu.memory_space<vmem>>, vector<8x1xf32>
    %cst_7 = arith.constant -1.000000e+00 : f32
    %23 = vector.broadcast %cst_7 : f32 to vector<8x1xf32>
    %24 = arith.cmpf one, %22, %23 : vector<8x1xf32>
    %25 = arith.extui %24 : vector<8x1xi1> to vector<8x1xi32>
    %26 = arith.sitofp %25 : vector<8x1xi32> to vector<8x1xf32>
    %cst_8 = arith.constant -1.000000e+00 : f32
    %27 = vector.broadcast %cst_8 : f32 to vector<8x1xf32>
    %28 = arith.cmpf oeq, %22, %27 : vector<8x1xf32>
    %29 = arith.extui %28 : vector<8x1xi1> to vector<8x1xi32>
    %30 = arith.sitofp %29 : vector<8x1xi32> to vector<8x1xf32>
    %c0_9 = arith.constant 0 : index
    %c0_10 = arith.constant 0 : index
    %31 = vector.load %arg4[%c0_9, %c0_10] : memref<5x32xf32, #tpu.memory_space<vmem>>, vector<1x32xf32>
    %32 = vector.broadcast %30 : vector<8x1xf32> to vector<8x32xf32>
    %33 = vector.broadcast %31 : vector<1x32xf32> to vector<8x32xf32>
    %34 = arith.mulf %32, %33 : vector<8x32xf32>
    %cst_11 = arith.constant 0.000000e+00 : f32
    %35 = vector.broadcast %cst_11 : f32 to vector<8x1xf32>
    %36 = arith.cmpf oeq, %22, %35 : vector<8x1xf32>
    %37 = arith.extui %36 : vector<8x1xi1> to vector<8x1xi32>
    %38 = arith.sitofp %37 : vector<8x1xi32> to vector<8x1xf32>
    %c1 = arith.constant 1 : index
    %c0_12 = arith.constant 0 : index
    %39 = vector.load %arg4[%c1, %c0_12] : memref<5x32xf32, #tpu.memory_space<vmem>>, vector<1x32xf32>
    %40 = vector.broadcast %38 : vector<8x1xf32> to vector<8x32xf32>
    %41 = vector.broadcast %39 : vector<1x32xf32> to vector<8x32xf32>
    %42 = arith.mulf %40, %41 : vector<8x32xf32>
    %43 = arith.addf %34, %42 : vector<8x32xf32>
    %cst_13 = arith.constant 1.000000e+00 : f32
    %44 = vector.broadcast %cst_13 : f32 to vector<8x1xf32>
    %45 = arith.cmpf oeq, %22, %44 : vector<8x1xf32>
    %46 = arith.extui %45 : vector<8x1xi1> to vector<8x1xi32>
    %47 = arith.sitofp %46 : vector<8x1xi32> to vector<8x1xf32>
    %c2 = arith.constant 2 : index
    %c0_14 = arith.constant 0 : index
    %48 = vector.load %arg4[%c2, %c0_14] : memref<5x32xf32, #tpu.memory_space<vmem>>, vector<1x32xf32>
    %49 = vector.broadcast %47 : vector<8x1xf32> to vector<8x32xf32>
    %50 = vector.broadcast %48 : vector<1x32xf32> to vector<8x32xf32>
    %51 = arith.mulf %49, %50 : vector<8x32xf32>
    %52 = arith.addf %43, %51 : vector<8x32xf32>
    %cst_15 = arith.constant 2.000000e+00 : f32
    %53 = vector.broadcast %cst_15 : f32 to vector<8x1xf32>
    %54 = arith.cmpf oeq, %22, %53 : vector<8x1xf32>
    %55 = arith.extui %54 : vector<8x1xi1> to vector<8x1xi32>
    %56 = arith.sitofp %55 : vector<8x1xi32> to vector<8x1xf32>
    %c3 = arith.constant 3 : index
    %c0_16 = arith.constant 0 : index
    %57 = vector.load %arg4[%c3, %c0_16] : memref<5x32xf32, #tpu.memory_space<vmem>>, vector<1x32xf32>
    %58 = vector.broadcast %56 : vector<8x1xf32> to vector<8x32xf32>
    %59 = vector.broadcast %57 : vector<1x32xf32> to vector<8x32xf32>
    %60 = arith.mulf %58, %59 : vector<8x32xf32>
    %61 = arith.addf %52, %60 : vector<8x32xf32>
    %cst_17 = arith.constant 3.000000e+00 : f32
    %62 = vector.broadcast %cst_17 : f32 to vector<8x1xf32>
    %63 = arith.cmpf oeq, %22, %62 : vector<8x1xf32>
    %64 = arith.extui %63 : vector<8x1xi1> to vector<8x1xi32>
    %65 = arith.sitofp %64 : vector<8x1xi32> to vector<8x1xf32>
    %c4 = arith.constant 4 : index
    %c0_18 = arith.constant 0 : index
    %66 = vector.load %arg4[%c4, %c0_18] : memref<5x32xf32, #tpu.memory_space<vmem>>, vector<1x32xf32>
    %67 = vector.broadcast %65 : vector<8x1xf32> to vector<8x32xf32>
    %68 = vector.broadcast %66 : vector<1x32xf32> to vector<8x32xf32>
    %69 = arith.mulf %67, %68 : vector<8x32xf32>
    %70 = arith.addf %61, %69 : vector<8x32xf32>
    %71 = vector.broadcast %26 : vector<8x1xf32> to vector<8x32xf32>
    %72 = arith.mulf %21, %71 : vector<8x32xf32>
    %73 = arith.addf %72, %70 : vector<8x32xf32>
    %c0_19 = arith.constant 0 : index
    %c0_20 = arith.constant 0 : index
    %74 = vector.load %arg5[%c0_19, %c0_20] : memref<8x32xf32, #tpu.memory_space<vmem>>, vector<8x32xf32>
    tpu.vector_store %arg5[%c0_19, %c0_20], %73 {strides = array<i32>} : memref<8x32xf32, #tpu.memory_space<vmem>>, vector<8x32xf32>,
    return
  }
  func.func @transform_0(%arg0: i32) -> (i32, i32) {
    %c0_i32 = arith.constant 0 : i32
    %c0_i32_0 = arith.constant 0 : i32
    %c0_i32_1 = arith.constant 0 : i32
    return %c0_i32, %c0_i32_0 : i32, i32
  }
  func.func @transform_1(%arg0: i32) -> (i32, i32) {
    %c0_i32 = arith.constant 0 : i32
    %c0_i32_0 = arith.constant 0 : i32
    %c0_i32_1 = arith.constant 0 : i32
    return %c0_i32, %c0_i32_0 : i32, i32
  }
  func.func @transform_2(%arg0: i32) -> (i32, i32) {
    %c0_i32 = arith.constant 0 : i32
    %c0_i32_0 = arith.constant 0 : i32
    %c0_i32_1 = arith.constant 0 : i32
    return %c0_i32, %c0_i32_0 : i32, i32
  }
  func.func @transform_3(%arg0: i32) -> (i32, i32) {
    %c0_i32 = arith.constant 0 : i32
    %c0_i32_0 = arith.constant 0 : i32
    %c0_i32_1 = arith.constant 0 : i32
    return %c0_i32, %c0_i32_0 : i32, i32
  }
  func.func @transform_4(%arg0: i32) -> (i32, i32) {
    %c0_i32 = arith.constant 0 : i32
    %c0_i32_0 = arith.constant 0 : i32
    %c0_i32_1 = arith.constant 0 : i32
    return %c0_i32, %c0_i32_0 : i32, i32
  }
}

</mosaic_0001>

<llo_original>
// kernel: tpu_custom_call.1
$region0: #{tpu_custom_call.1}
  #allocation0 [shape = 'u32[]', space=smem, size = 0x4, offset = 0x4, fixed_abs, tag = 'smem constant byte address 0x4 - core index']
  #allocation1 [shape = 'u32[144,128]{1,0:T(1,128)}', space=vmem, size = 0x12000, scoped, tag = 'internal scratch']
  %s0 = inlined_call_operand.vmem [shape: f32[8,2], index: 0, kind: input, shape index: {}]
  %s1 = inlined_call_operand.vmem [shape: f32[8,1], index: 1, kind: input, shape index: {}]
  %s2 = inlined_call_operand.vmem [shape: f32[2,16], index: 2, kind: input, shape index: {}]
  %s3 = inlined_call_operand.vmem [shape: f32[5,32], index: 3, kind: input, shape index: {}]
  %s4 = inlined_call_operand.hbm [shape: f32[8,32], index: 4, kind: output, shape index: {}]
  %s5 = sld [smem:[#allocation0]]
  $region26: #{tpu_custom_call.1} parent=0
    _
  %s7 = ssub.s32 1, %s5
  %s8 = scalar_select 0, %s7, %s5
  $region1: #{tpu_custom_call.1} parent=0
    #allocation2 [shape = 'u8[4096]{0}', space=vmem, size = 0x1000, scoped, tag = 'output window, operand 0, single buffered']
    #allocation3 [shape = 's32[1]{0}', space=sflag, size = 0x4, scoped, tag = 'scoped memory for tpu_custom_call.1']
    %9 = vsyncpa [#allocation3], 0
    // Predicated region
    $region2: #{tpu_custom_call.1} parent=1 // pred_check
      _
    $region3: #{tpu_custom_call.1} parent=1 // pred_check_branch
      %11 = sbr.rel (0) target = $region5
    $region4: #{tpu_custom_call.1} parent=1 // pred_region
      _
    $region5: #{tpu_custom_call.1} parent=1 // pred_fallthru
      _
    // Predicated region
    $region6: #{tpu_custom_call.1} parent=1 // pred_check
      _
    $region7: #{tpu_custom_call.1} parent=1 // pred_check_branch
      %13 = sbr.rel (0) target = $region9
    $region8: #{tpu_custom_call.1} parent=1 // pred_region
      _
    $region9: #{tpu_custom_call.1} parent=1 // pred_fallthru
      _
    // Predicated region
    $region10: #{tpu_custom_call.1} parent=1 // pred_check
      _
    $region11: #{tpu_custom_call.1} parent=1 // pred_check_branch
      %15 = sbr.rel (0) target = $region13
    $region12: #{tpu_custom_call.1} parent=1 // pred_region
      _
    $region13: #{tpu_custom_call.1} parent=1 // pred_fallthru
      _
    // Predicated region
    $region14: #{tpu_custom_call.1} parent=1 // pred_check
      _
    $region15: #{tpu_custom_call.1} parent=1 // pred_check_branch
      %17 = sbr.rel (0) target = $region17
    $region16: #{tpu_custom_call.1} parent=1 // pred_region
      _
    $region17: #{tpu_custom_call.1} parent=1 // pred_fallthru
      _
    %v18 = vld [vmem:[%s0] sm:$0xff]
    %v19 = vmul.f32 %v18, 2.0
    %v20 = vsub.f32 %v19, 1.0
    %v21 = vld [vmem:[%s2] sm:$0x3]
    %23 = vset.pattern.permute.xlu0 0
    %24 = vperm.xlu0 %23, %v20
    %v25 = vpop.permute.xlu0 %24
    %v27 = vlaneseq
    %v28 = vshrl.u32 %v27, 7
    %v29 = vsub.s32 0, %v28
    %v30 = vrot.slane %v21, %v29
    %v31 = vmul.f32 %v25, %v30
    %32 = vset.pattern.permute.xlu0 1
    %33 = vperm.xlu0 %32, %v20
    %v34 = vpop.permute.xlu0 %33
    %v36 = vlaneseq
    %v37 = vshrl.u32 %v36, 7
    %v38 = vsub.s32 1, %v37
    %v39 = vrot.slane %v21, %v38
    %v40 = vmul.f32 %v34, %v39
    %v41 = vadd.f32 %v31, %v40
    %v42 = vmul.f32 %v41, 6.2831855
    %v43 = vand.u32 2147483647, %v42
    %vm44 = vcmp.le.f32.partialorder %v43, 0.7853982
    %vm45 = vcmp.lt.s32.totalorder %v42, 0
    %v46 = vand.u32 %v42, 2139095040
    %v47 = vshrl.u32 %v46, 23
    %v48 = vsub.s32 %v47, 127
    %v49 = vand.u32 2147483647, %v42
    %v50 = vand.u32 %v49, 8388607
    %v51 = vor.u32 %v50, 8388608
    %v52 = vsub.s32 0, %v51
    %v53 = vadd.s32 %v48, 1
    %vm54 = vcmp.gt.s32.totalorder %v53, 0
    %v55 = vsel %vm54, %v53, 0
    %v56 = vshrl.u32 %v55, 5
    %v57 = vand.u32 %v55, 31
    %v58 = vsub.s32 32, %v57
    %v59 = vshrl.u32 683565275, %v58
    %v60 = vshll.u32 683565275, %v57
    %v61 = vshrl.u32 2475754826, %v58
    %v62 = vor.u32 %v60, %v61
    %v63 = vshll.u32 2475754826, %v57
    %v64 = vshrl.u32 2131351028, %v58
    %v65 = vor.u32 %v63, %v64
    %v66 = vshll.u32 2131351028, %v57
    %v67 = vshrl.u32 2102212464, %v58
    %v68 = vor.u32 %v66, %v67
    %v69 = vshll.u32 2102212464, %v57
    %v70 = vshrl.u32 920167782, %v58
    %v71 = vor.u32 %v69, %v70
    %v72 = vshll.u32 920167782, %v57
    %v73 = vshrl.u32 1326507024, %v58
    %v74 = vor.u32 %v72, %v73
    %vm75 = vcmp.lt.s32.totalorder %v56, 1
    %vm76 = vcmp.lt.s32.totalorder %v56, 2
    %vm77 = vcmp.lt.s32.totalorder %v56, 3
    %vm78 = vcmp.lt.s32.totalorder %v56, 4
    %v79 = vsel %vm75, %v59, %v62
    %v80 = vsel %vm78, %v68, 2102212464
    %v81 = vsel %vm77, %v65, %v80
    %v82 = vsel %vm76, %v79, %v81
    %v83 = vsel %vm75, %v62, %v65
    %v84 = vsel %vm78, %v71, 920167782
    %v85 = vsel %vm77, %v68, %v84
    %v86 = vsel %vm76, %v83, %v85
    %v87 = vsel %vm75, %v65, %v68
    %v88 = vsel %vm78, %v74, 1326507024
    %v89 = vsel %vm77, %v71, %v88
    %v90 = vsel %vm76, %v87, %v89
    %v91 = vshll.u32 %v51, 8
    %v92 = vmul.u32.u64.compose %v91, %v90
    %v93 = vextract.low.u32 %v92
    %v94 = vextract.high.u32 %v92
    %v95 = vmul.u32.u64.compose %v91, %v86
    %v96 = vextract.low.u32 %v95
    %v97 = vextract.high.u32 %v95
    %v98 = vmul.u32 %v91, %v82
    %v99 = vadd.s32 %v94, %v96
    %vm100 = vc.u32 %v94, %v96
    %v101 = vadd.s32 %v97, 1
    %v102 = vsel %vm100, %v101, %v97
    %v103 = vadd.s32 %v98, %v102
    %v104 = vadd.s32 %v103, 536870912
    %v105 = vshrl.u32 %v104, 30
    %v106 = vshll.u32 %v105, 30
    %v107 = vsub.s32 %v103, %v106
    %vm108 = vcmp.lt.s32.totalorder %v107, 0
    %v109 = vsub.s32 0, %v107
    %v110 = vsel %vm108, %v109, %v107
    %v111 = vclz %v110
    %v112 = vsub.s32 %v111, 2
    %vm113 = vcmp.gt.s32.totalorder 0, %v112
    %v114 = vsel %vm113, 0, %v112
    %v115 = vsub.s32 32, %v114
    %v116 = vshll.u32 %v107, %v114
    %v117 = vshrl.u32 %v99, %v115
    %v118 = vor.u32 %v116, %v117
    %v119 = vsub.s32 4294967266, %v114
    %v120 = vadd.s32 %v119, 127
    %v121 = vshll.u32 %v120, 23
    %v122 = vor.u32 4788187, %v121
    %v123 = vand.u32 2147483647, %v122
    %v125 = vcvt.s32.f32 %v118
    %v126 = vmul.f32 %v125, %v123
    %v127 = vxor.u32 %v126, 2147483648
    %v128 = vsel %vm45, %v127, %v126
    %v129 = vsub.s32 4, %v105
    %v130 = vsel %vm45, %v129, %v105
    %v131 = vsel %vm44, %v42, %v128
    %v132 = vsel %vm44, 0, %v130
    %v133 = vcosq.f32.pop %v131
    %v134 = vsinq.f32.pop %v131
    %vm135 = vweird.f32 %v42
    %v136 = vadd.s32 %v132, 3
    %v137 = vand.u32 %v136, 3
    %vm138 = vcmp.lt.s32.totalorder %v137, 2
    %vm139 = vcmp.eq.s32.totalorder %v137, 0
    %v140 = vxor.u32 %v134, 2147483648
    %v141 = vsel %vm139, %v133, %v140
    %vm142 = vcmp.eq.s32.totalorder %v137, 2
    %v143 = vxor.u32 %v133, 2147483648
    %v144 = vsel %vm142, %v143, %v134
    %v145 = vsel %vm138, %v141, %v144
    %v146 = vsel %vm135, nan, %v145
    %v147 = vand.u32 2147483647, %v42
    %vm148 = vcmp.le.f32.partialorder %v147, 0.7853982
    %vm149 = vcmp.lt.s32.totalorder %v42, 0
    %v150 = vand.u32 %v42, 2139095040
    %v151 = vshrl.u32 %v150, 23
    %v152 = vsub.s32 %v151, 127
    %v153 = vand.u32 2147483647, %v42
    %v154 = vand.u32 %v153, 8388607
    %v155 = vor.u32 %v154, 8388608
    %v156 = vsub.s32 0, %v155
    %v157 = vadd.s32 %v152, 1
    %vm158 = vcmp.gt.s32.totalorder %v157, 0
    %v159 = vsel %vm158, %v157, 0
    %v160 = vshrl.u32 %v159, 5
    %v161 = vand.u32 %v159, 31
    %v162 = vsub.s32 32, %v161
    %v163 = vshrl.u32 683565275, %v162
    %v164 = vshll.u32 683565275, %v161
    %v165 = vshrl.u32 2475754826, %v162
    %v166 = vor.u32 %v164, %v165
    %v167 = vshll.u32 2475754826, %v161
    %v168 = vshrl.u32 2131351028, %v162
    %v169 = vor.u32 %v167, %v168
    %v170 = vshll.u32 2131351028, %v161
    %v171 = vshrl.u32 2102212464, %v162
    %v172 = vor.u32 %v170, %v171
    %v173 = vshll.u32 2102212464, %v161
    %v174 = vshrl.u32 920167782, %v162
    %v175 = vor.u32 %v173, %v174
    %v176 = vshll.u32 920167782, %v161
    %v177 = vshrl.u32 1326507024, %v162
    %v178 = vor.u32 %v176, %v177
    %vm179 = vcmp.lt.s32.totalorder %v160, 1
    %vm180 = vcmp.lt.s32.totalorder %v160, 2
    %vm181 = vcmp.lt.s32.totalorder %v160, 3
    %vm182 = vcmp.lt.s32.totalorder %v160, 4
    %v183 = vsel %vm179, %v163, %v166
    %v184 = vsel %vm182, %v172, 2102212464
    %v185 = vsel %vm181, %v169, %v184
    %v186 = vsel %vm180, %v183, %v185
    %v187 = vsel %vm179, %v166, %v169
    %v188 = vsel %vm182, %v175, 920167782
    %v189 = vsel %vm181, %v172, %v188
    %v190 = vsel %vm180, %v187, %v189
    %v191 = vsel %vm179, %v169, %v172
    %v192 = vsel %vm182, %v178, 1326507024
    %v193 = vsel %vm181, %v175, %v192
    %v194 = vsel %vm180, %v191, %v193
    %v195 = vshll.u32 %v155, 8
    %v196 = vmul.u32.u64.compose %v195, %v194
    %v197 = vextract.low.u32 %v196
    %v198 = vextract.high.u32 %v196
    %v199 = vmul.u32.u64.compose %v195, %v190
    %v200 = vextract.low.u32 %v199
    %v201 = vextract.high.u32 %v199
    %v202 = vmul.u32 %v195, %v186
    %v203 = vadd.s32 %v198, %v200
    %vm204 = vc.u32 %v198, %v200
    %v205 = vadd.s32 %v201, 1
    %v206 = vsel %vm204, %v205, %v201
    %v207 = vadd.s32 %v202, %v206
    %v208 = vadd.s32 %v207, 536870912
    %v209 = vshrl.u32 %v208, 30
    %v210 = vshll.u32 %v209, 30
    %v211 = vsub.s32 %v207, %v210
    %vm212 = vcmp.lt.s32.totalorder %v211, 0
    %v213 = vsub.s32 0, %v211
    %v214 = vsel %vm212, %v213, %v211
    %v215 = vclz %v214
    %v216 = vsub.s32 %v215, 2
    %vm217 = vcmp.gt.s32.totalorder 0, %v216
    %v218 = vsel %vm217, 0, %v216
    %v219 = vsub.s32 32, %v218
    %v220 = vshll.u32 %v211, %v218
    %v221 = vshrl.u32 %v203, %v219
    %v222 = vor.u32 %v220, %v221
    %v223 = vsub.s32 4294967266, %v218
    %v224 = vadd.s32 %v223, 127
    %v225 = vshll.u32 %v224, 23
    %v226 = vor.u32 4788187, %v225
    %v227 = vand.u32 2147483647, %v226
    %v229 = vcvt.s32.f32 %v222
    %v230 = vmul.f32 %v229, %v227
    %v231 = vxor.u32 %v230, 2147483648
    %v232 = vsel %vm149, %v231, %v230
    %v233 = vsub.s32 4, %v209
    %v234 = vsel %vm149, %v233, %v209
    %v235 = vsel %vm148, %v42, %v232
    %v236 = vsel %vm148, 0, %v234
    %v237 = vcosq.f32.pop %v235
    %v238 = vsinq.f32.pop %v235
    %vm239 = vweird.f32 %v42
    %v240 = vand.u32 %v236, 3
    %vm241 = vcmp.lt.s32.totalorder %v240, 2
    %vm242 = vcmp.eq.s32.totalorder %v240, 0
    %v243 = vxor.u32 %v238, 2147483648
    %v244 = vsel %vm242, %v237, %v243
    %vm245 = vcmp.eq.s32.totalorder %v240, 2
    %v246 = vxor.u32 %v237, 2147483648
    %v247 = vsel %vm245, %v246, %v238
    %v248 = vsel %vm241, %v244, %v247
    %v249 = vsel %vm239, nan, %v248
    %251 = vrot.lane.b32.xlu0 %v249, 16
    %v252 = vpop.permute.xlu0 %251
    %vm254 = vcmask 130048
    %v255 = vsel %vm254, %v146, %v252
    %v256 = vld [vmem:[%s1] sm:$0xff]
    %vm257 = vcmp.ne.f32.partialorder %v256, -1.0
    %v258 = vsel %vm257, 1, 0
    %v259 = vcvt.s32.f32 %v258
    %vm260 = vcmp.eq.f32.partialorder %v256, -1.0
    %v261 = vsel %vm260, 1, 0
    %v262 = vcvt.s32.f32 %v261
    %v263 = vld [vmem:[%s3] sm:$0x1]
    %265 = vset.pattern.permute.xlu0 0
    %266 = vperm.xlu0 %265, %v262
    %v267 = vpop.permute.xlu0 %266
    %v269 = vlaneseq
    %v270 = vshrl.u32 %v269, 7
    %v271 = vsub.s32 0, %v270
    %v272 = vrot.slane %v263, %v271
    %v273 = vmul.f32 %v267, %v272
    %vm274 = vcmp.eq.f32.partialorder %v256, 0.0
    %v275 = vsel %vm274, 1, 0
    %v276 = vcvt.s32.f32 %v275
    %v277 = vld [vmem:[%s3 + $0x1] sm:$0x1]
    %279 = vset.pattern.permute.xlu0 0
    %280 = vperm.xlu0 %279, %v276
    %v281 = vpop.permute.xlu0 %280
    %v283 = vlaneseq
    %v284 = vshrl.u32 %v283, 7
    %v285 = vsub.s32 0, %v284
    %v286 = vrot.slane %v277, %v285
    %v287 = vmul.f32 %v281, %v286
    %v288 = vadd.f32 %v273, %v287
    %vm289 = vcmp.eq.f32.partialorder %v256, 1.0
    %v290 = vsel %vm289, 1, 0
    %v291 = vcvt.s32.f32 %v290
    %v292 = vld [vmem:[%s3 + $0x2] sm:$0x1]
    %294 = vset.pattern.permute.xlu0 0
    %295 = vperm.xlu0 %294, %v291
    %v296 = vpop.permute.xlu0 %295
    %v298 = vlaneseq
    %v299 = vshrl.u32 %v298, 7
    %v300 = vsub.s32 0, %v299
    %v301 = vrot.slane %v292, %v300
    %v302 = vmul.f32 %v296, %v301
    %v303 = vadd.f32 %v288, %v302
    %vm304 = vcmp.eq.f32.partialorder %v256, 2.0
    %v305 = vsel %vm304, 1, 0
    %v306 = vcvt.s32.f32 %v305
    %v307 = vld [vmem:[%s3 + $0x3] sm:$0x1]
    %309 = vset.pattern.permute.xlu0 0
    %310 = vperm.xlu0 %309, %v306
    %v311 = vpop.permute.xlu0 %310
    %v313 = vlaneseq
    %v314 = vshrl.u32 %v313, 7
    %v315 = vsub.s32 0, %v314
    %v316 = vrot.slane %v307, %v315
    %v317 = vmul.f32 %v311, %v316
    %v318 = vadd.f32 %v303, %v317
    %vm319 = vcmp.eq.f32.partialorder %v256, 3.0
    %v320 = vsel %vm319, 1, 0
    %v321 = vcvt.s32.f32 %v320
    %v322 = vld [vmem:[%s3 + $0x4] sm:$0x1]
    %324 = vset.pattern.permute.xlu0 0
    %325 = vperm.xlu0 %324, %v321
    %v326 = vpop.permute.xlu0 %325
    %v328 = vlaneseq
    %v329 = vshrl.u32 %v328, 7
    %v330 = vsub.s32 0, %v329
    %v331 = vrot.slane %v322, %v330
    %v332 = vmul.f32 %v326, %v331
    %v333 = vadd.f32 %v318, %v332
    %335 = vset.pattern.permute.xlu0 0
    %336 = vperm.xlu0 %335, %v259
    %v337 = vpop.permute.xlu0 %336
    %v339 = vmul.f32 %v255, %v337
    %v340 = vadd.f32 %v339, %v333
    %vm341 = vcmask 261120
    %342 = vst.msk [vmem:[#allocation2] sm:$0xff] %vm341, %v340
    // Predicated region
    $region18: #{tpu_custom_call.1} parent=1 // pred_check
      _
    $region19: #{tpu_custom_call.1} parent=1 // pred_check_branch
      %344 = sbr.rel (0) target = $region21
    $region20: #{tpu_custom_call.1} parent=1 // pred_region
      %s346 = ssub.s32 128, 128
      %347 = vsyncadd [#allocation3], %s346
      %s349 = sshll.u32 [#allocation2], 4
      %s350 = int_to_ptr.vmem [resolvable:$true] %s349
      %352 = dma.vmem_to_hbm [thread:$0]  %s350, 128, %s4, [#allocation3]
    $region21: #{tpu_custom_call.1} parent=1 // pred_fallthru
      _
    // Predicated region
    $region22: #{tpu_custom_call.1} parent=1 // pred_check
      _
    $region23: #{tpu_custom_call.1} parent=1 // pred_check_branch
      %354 = sbr.rel (0) target = $region25
    $region24: #{tpu_custom_call.1} parent=1 // pred_region
      %355 = dma.done [#allocation3], 128
    $region25: #{tpu_custom_call.1} parent=1 // pred_fallthru
      _
    %356 = vsyncpa [#allocation3], 1

</llo_original>
